<compile_context>
chip_gen: v7x
topology: tpu7x:2x2x1
jax: 0.10.0
libtpu: 0.0.40
codegen_flags: <defaults>
</compile_context>

<pallas_src>
from functools import partial

import jax
import jax.numpy as jnp
from jax.experimental import pallas as pl
from jax.experimental.pallas import tpu as pltpu


# ---------------------------------------------------------------------------
# Kernels
# ---------------------------------------------------------------------------

def _rezero_mlp_fused_kernel(x_ref, w_ref, b_ref, g_ref, o_ref, *, depth):
    """Whole MLP in one invocation; all operands resident in VMEM.

    w_ref: (depth, E_in, E_out) bf16, lr_mul pre-folded.
    b_ref: (depth, 1, E)        f32,  lr_mul pre-folded.
    g_ref: (1,) f32 in SMEM (Rezero gate).
    """
    x = x_ref[...].astype(jnp.float32)                            # (B, E)

    # F.normalize(x, dim=1): x * rsqrt(max(sum(x^2), eps^2)); single EUP op.
    ssq = jnp.sum(x * x, axis=1, keepdims=True)                   # (B, 1)
    x = x * jax.lax.rsqrt(jnp.maximum(ssq, 1e-24))

    for d in range(depth):                                        # static unroll
        w = w_ref[d]                                              # (E_in, E_out)
        y = jax.lax.dot_general(                                  # x @ W, MXU
            x.astype(w.dtype), w,
            dimension_numbers=(((1,), (0,)), ((), ())),
            preferred_element_type=jnp.float32)                   # (B, E) f32
        y = y + b_ref[d]                                          # (1, E) bias
        x = jnp.where(y >= 0.0, y, 0.2 * y)                       # LeakyReLU(0.2)

    # Rezero gate.
    o_ref[...] = (x * g_ref[0]).astype(o_ref.dtype)


def _rezero_mlp_grid_kernel(x_ref, w_ref, b_ref, g_ref, o_ref, x_carry, *, l_blk):
    """One grid step per L_BLK layers; next block's weight DMA overlaps compute.

    w_ref: (l_blk, E_in, E_out) bf16 (this step's layers, streamed).
    b_ref: (depth, 1, E) f32 (whole bias stack, resident; constant index map).
    x_carry: (B, E) f32 VMEM scratch carrying the activation across steps.
    """
    d = pl.program_id(0)

    @pl.when(d == 0)
    def _():
        x0 = x_ref[...].astype(jnp.float32)
        ssq = jnp.sum(x0 * x0, axis=1, keepdims=True)
        x_carry[...] = x0 * jax.lax.rsqrt(jnp.maximum(ssq, 1e-24))

    x = x_carry[...]                                              # (B, E) f32
    for l in range(l_blk):                                        # static unroll
        w = w_ref[l]                                              # (E_in, E_out)
        y = jax.lax.dot_general(
            x.astype(w.dtype), w,
            dimension_numbers=(((1,), (0,)), ((), ())),
            preferred_element_type=jnp.float32)
        y = y + b_ref[d * l_blk + l]                              # resident bias
        x = jnp.where(y >= 0.0, y, 0.2 * y)
    x_carry[...] = x

    @pl.when(d == pl.num_programs(0) - 1)
    def _():
        o_ref[...] = (x * g_ref[0]).astype(o_ref.dtype)


# ---------------------------------------------------------------------------
# One-time parameter preprocessing (do NOT redo this per forward call)
# ---------------------------------------------------------------------------

def prepare_rezero_mlp_params(w, b, g, *, lr_mul=0.1, weights_dtype=jnp.bfloat16):
    """Fold lr_mul, pre-transpose to (depth, E_in, E_out), quantize weights once.

    w: (depth, E_out, E_in) f32 (PyTorch F.linear layout); b: (depth, E_out);
    g: scalar Rezero gate.  Returns a dict of device arrays meant to be kept
    and reused across calls (this is the persistent-bf16 parameter stack).
    """
    depth, e_out, _ = w.shape
    w_prep = jnp.transpose(w.astype(jnp.float32) * lr_mul, (0, 2, 1))
    w_prep = w_prep.astype(weights_dtype)                         # cast once
    b_prep = (b.astype(jnp.float32) * lr_mul).reshape(depth, 1, e_out)
    g_prep = jnp.asarray(g, dtype=jnp.float32).reshape((1,))
    return {"w": w_prep, "b": b_prep, "g": g_prep}


# ---------------------------------------------------------------------------
# Wrapper
# ---------------------------------------------------------------------------

def _vmem_capacity_bytes():
    try:
        return int(pltpu.get_tpu_info().vmem_capacity_bytes)
    except Exception:
        return 64 * 1024 * 1024        # conservative (v7x-sized) fallback


def _pick_layer_block(depth, emb, wt_itemsize, budget_bytes):
    # Largest L_BLK <= 4 dividing depth whose double-buffered weight footprint
    # stays well inside the budget (v7x has only 64 MiB VMEM).
    for cand in (4, 3, 2, 1):
        if depth % cand == 0 and 2 * cand * emb * emb * wt_itemsize <= budget_bytes:
            return cand
    return 1


def rezero_style_mlp(x, params, *, use_grid=None, layer_block=None):
    """Rezero(fn)(x) = fn(x) * g with fn = style MLP.

    x: (B, E); params: output of prepare_rezero_mlp_params (persistent).
    For throughput, batch latents so B is large (>=128); the weight stream is
    read once per call regardless of B.
    """
    w, b, g = params["w"], params["b"], params["g"]
    B, E = x.shape
    depth = w.shape[0]

    w_bytes = w.size * w.dtype.itemsize
    vmem_cap = _vmem_capacity_bytes()
    # Fused (whole stack resident) while the weights fit a generation-aware
    # budget; otherwise stream layer blocks over a depth grid.
    fused_budget = min(24 << 20, max(8 << 20, vmem_cap // 5))
    if use_grid is None:
        use_grid = w_bytes > fused_budget

    out_shape = jax.ShapeDtypeStruct((B, E), x.dtype)

    if not use_grid:
        needed = w_bytes + b.size * b.dtype.itemsize + 4 * B * E * 4 + (2 << 20)
        vmem_limit = int(min(vmem_cap // 2, max(needed, 16 << 20)))
        kernel = partial(_rezero_mlp_fused_kernel, depth=depth)
        return pl.pallas_call(
            kernel,
            out_shape=out_shape,
            in_specs=[
                pl.BlockSpec(memory_space=pltpu.MemorySpace.VMEM),   # x
                pl.BlockSpec(memory_space=pltpu.MemorySpace.VMEM),   # weights
                pl.BlockSpec(memory_space=pltpu.MemorySpace.VMEM),   # bias
                pl.BlockSpec(memory_space=pltpu.MemorySpace.SMEM),   # g scalar
            ],
            out_specs=pl.BlockSpec(memory_space=pltpu.MemorySpace.VMEM),
            compiler_params=pltpu.CompilerParams(vmem_limit_bytes=vmem_limit),
        )(x, w, b, g)

    if layer_block is None:
        layer_block = _pick_layer_block(depth, E, w.dtype.itemsize, fused_budget)
    assert depth % layer_block == 0
    n_steps = depth // layer_block

    kernel = partial(_rezero_mlp_grid_kernel, l_blk=layer_block)
    return pl.pallas_call(
        kernel,
        out_shape=out_shape,
        grid=(n_steps,),
        in_specs=[
            pl.BlockSpec((B, E), lambda d: (0, 0)),                # x (resident)
            pl.BlockSpec((layer_block, E, E), lambda d: (d, 0, 0)),  # weight block
            pl.BlockSpec((depth, 1, E), lambda d: (0, 0, 0)),      # bias (resident)
            pl.BlockSpec(memory_space=pltpu.MemorySpace.SMEM),     # g scalar
        ],
        out_specs=pl.BlockSpec((B, E), lambda d: (0, 0)),
        scratch_shapes=[pltpu.VMEM((B, E), jnp.float32)],          # activation carry
        compiler_params=pltpu.CompilerParams(
            dimension_semantics=("arbitrary",)),                   # sequential chain
    )(x, w, b, g)


# ---------------------------------------------------------------------------
# Pure-JAX reference (PyTorch forward semantics on the same prepared params)
# ---------------------------------------------------------------------------

def _reference_from_params(x, params):
    w = params["w"].astype(jnp.float32)    # (depth, E_in, E_out), lr_mul folded
    b = params["b"].astype(jnp.float32)    # (depth, 1, E), lr_mul folded
    g = params["g"][0]
    x = x.astype(jnp.float32)
    norm = jnp.sqrt(jnp.sum(x * x, axis=1, keepdims=True))
    x = x / jnp.maximum(norm, 1e-12)
    for d in range(w.shape[0]):
        y = jnp.dot(x, w[d], precision=jax.lax.Precision.HIGHEST) + b[d]
        x = jnp.where(y >= 0, y, 0.2 * y)
    return x * g


if __name__ == "__main__":
    B, EMB, DEPTH = 8, 128, 4
    LR_MUL = 0.1

    key = jax.random.PRNGKey(0)
    kx, kw, kb = jax.random.split(key, 3)

    x = jax.random.normal(kx, (B, EMB), dtype=jnp.float32)
    # EqualLinear layout: weight = (out_dim, in_dim); nonzero bias to exercise it.
    w = jax.random.normal(kw, (DEPTH, EMB, EMB), dtype=jnp.float32)
    b = jax.random.normal(kb, (DEPTH, EMB), dtype=jnp.float32) * 0.1
    g = jnp.float32(0.7)   # learned Rezero gate (nn.Parameter; init value is 0.0)

    # One-time preprocessing (persistent bf16, pre-transposed, lr_mul folded).
    params = jax.tree.map(jax.block_until_ready,
                          prepare_rezero_mlp_params(w, b, g, lr_mul=LR_MUL))

    ref = _reference_from_params(x, params)

    out_fused = jax.block_until_ready(rezero_style_mlp(x, params, use_grid=False))
    out_grid = jax.block_until_ready(
        rezero_style_mlp(x, params, use_grid=True, layer_block=2))

    assert out_fused.shape == (B, EMB) and out_grid.shape == (B, EMB)
    assert jnp.allclose(out_fused, ref, atol=5e-3, rtol=5e-2), "fused mismatch"
    assert jnp.allclose(out_grid, ref, atol=5e-3, rtol=5e-2), "grid mismatch"

    # Rezero initialization (g = 0) -> output is exactly zero.
    params_zero = prepare_rezero_mlp_params(w, b, jnp.float32(0.0), lr_mul=LR_MUL)
    out_zero = jax.block_until_ready(rezero_style_mlp(x, params_zero))
    assert bool(jnp.all(out_zero == 0.0)), "g=0 must zero the output"

    print("KERNEL_OK")
</pallas_src>

<mosaic_0001>
module attributes {stable_mosaic.version = 11 : i64} {
  func.func @_rezero_mlp_fused_kernel(%arg0: memref<8x128xf32, #tpu.memory_space<vmem>>, %arg1: memref<4x128x128xbf16, #tpu.memory_space<vmem>>, %arg2: memref<4x1x128xf32, #tpu.memory_space<vmem>>, %arg3: memref<1xf32, #tpu.memory_space<smem>>, %arg4: memref<8x128xf32, #tpu.memory_space<vmem>>) attributes {dimension_semantics = [], scalar_prefetch = 0 : i64, scratch_operands = 0 : i64, tpu.core_type = #tpu.core_type<tc>} {
    %c0 = arith.constant 0 : index
    %c0_0 = arith.constant 0 : index
    %0 = vector.load %arg0[%c0, %c0_0] : memref<8x128xf32, #tpu.memory_space<vmem>>, vector<8x128xf32>
    %1 = arith.mulf %0, %0 : vector<8x128xf32>
    %cst = arith.constant dense<0.000000e+00> : vector<8xf32>
    %2 = vector.multi_reduction <add>, %1, %cst [1] : vector<8x128xf32> to vector<8xf32>
    %3 = vector.shape_cast %2 : vector<8xf32> to vector<8x1xf32>
    %cst_1 = arith.constant 1.000000e-24 : f32
    %4 = vector.broadcast %cst_1 : f32 to vector<8x1xf32>
    %5 = arith.maximumf %3, %4 : vector<8x1xf32>
    %6 = math.rsqrt %5 : vector<8x1xf32>
    %7 = vector.broadcast %6 : vector<8x1xf32> to vector<8x128xf32>
    %8 = arith.mulf %0, %7 : vector<8x128xf32>
    %c0_2 = arith.constant 0 : index
    %c0_3 = arith.constant 0 : index
    %c0_4 = arith.constant 0 : index
    %9 = vector.load %arg1[%c0_2, %c0_3, %c0_4] : memref<4x128x128xbf16, #tpu.memory_space<vmem>>, vector<1x128x128xbf16>
    %10 = vector.shape_cast %9 : vector<1x128x128xbf16> to vector<128x128xbf16>
    %11 = arith.truncf %8 : vector<8x128xf32> to vector<8x128xbf16>
    %cst_5 = arith.constant dense<0.000000e+00> : vector<8x128xf32>
    %12 = tpu.matmul %11, %10, %cst_5 {dimension_numbers = #tpu.dot_dimension_numbers<[1], [0], [0], [1], [0, 0, 1, 1], [], []>} : vector<8x128xbf16>, vector<128x128xbf16>, vector<8x128xf32> -> vector<8x128xf32>
    %c0_6 = arith.constant 0 : index
    %c0_7 = arith.constant 0 : index
    %c0_8 = arith.constant 0 : index
    %13 = vector.load %arg2[%c0_6, %c0_7, %c0_8] : memref<4x1x128xf32, #tpu.memory_space<vmem>>, vector<1x1x128xf32>
    %14 = vector.shape_cast %13 : vector<1x1x128xf32> to vector<1x128xf32>
    %15 = vector.broadcast %14 : vector<1x128xf32> to vector<8x128xf32>
    %16 = arith.addf %12, %15 : vector<8x128xf32>
    %cst_9 = arith.constant 0.000000e+00 : f32
    %17 = vector.broadcast %cst_9 : f32 to vector<8x128xf32>
    %18 = arith.cmpf oge, %16, %17 : vector<8x128xf32>
    %cst_10 = arith.constant 2.000000e-01 : f32
    %19 = vector.broadcast %cst_10 : f32 to vector<8x128xf32>
    %20 = arith.mulf %19, %16 : vector<8x128xf32>
    %21 = arith.select %18, %16, %20 : vector<8x128xi1>, vector<8x128xf32>
    %c1 = arith.constant 1 : index
    %c0_11 = arith.constant 0 : index
    %c0_12 = arith.constant 0 : index
    %22 = vector.load %arg1[%c1, %c0_11, %c0_12] : memref<4x128x128xbf16, #tpu.memory_space<vmem>>, vector<1x128x128xbf16>
    %23 = vector.shape_cast %22 : vector<1x128x128xbf16> to vector<128x128xbf16>
    %24 = arith.truncf %21 : vector<8x128xf32> to vector<8x128xbf16>
    %cst_13 = arith.constant dense<0.000000e+00> : vector<8x128xf32>
    %25 = tpu.matmul %24, %23, %cst_13 {dimension_numbers = #tpu.dot_dimension_numbers<[1], [0], [0], [1], [0, 0, 1, 1], [], []>} : vector<8x128xbf16>, vector<128x128xbf16>, vector<8x128xf32> -> vector<8x128xf32>
    %c1_14 = arith.constant 1 : index
    %c0_15 = arith.constant 0 : index
    %c0_16 = arith.constant 0 : index
    %26 = vector.load %arg2[%c1_14, %c0_15, %c0_16] : memref<4x1x128xf32, #tpu.memory_space<vmem>>, vector<1x1x128xf32>
    %27 = vector.shape_cast %26 : vector<1x1x128xf32> to vector<1x128xf32>
    %28 = vector.broadcast %27 : vector<1x128xf32> to vector<8x128xf32>
    %29 = arith.addf %25, %28 : vector<8x128xf32>
    %cst_17 = arith.constant 0.000000e+00 : f32
    %30 = vector.broadcast %cst_17 : f32 to vector<8x128xf32>
    %31 = arith.cmpf oge, %29, %30 : vector<8x128xf32>
    %cst_18 = arith.constant 2.000000e-01 : f32
    %32 = vector.broadcast %cst_18 : f32 to vector<8x128xf32>
    %33 = arith.mulf %32, %29 : vector<8x128xf32>
    %34 = arith.select %31, %29, %33 : vector<8x128xi1>, vector<8x128xf32>
    %c2 = arith.constant 2 : index
    %c0_19 = arith.constant 0 : index
    %c0_20 = arith.constant 0 : index
    %35 = vector.load %arg1[%c2, %c0_19, %c0_20] : memref<4x128x128xbf16, #tpu.memory_space<vmem>>, vector<1x128x128xbf16>
    %36 = vector.shape_cast %35 : vector<1x128x128xbf16> to vector<128x128xbf16>
    %37 = arith.truncf %34 : vector<8x128xf32> to vector<8x128xbf16>
    %cst_21 = arith.constant dense<0.000000e+00> : vector<8x128xf32>
    %38 = tpu.matmul %37, %36, %cst_21 {dimension_numbers = #tpu.dot_dimension_numbers<[1], [0], [0], [1], [0, 0, 1, 1], [], []>} : vector<8x128xbf16>, vector<128x128xbf16>, vector<8x128xf32> -> vector<8x128xf32>
    %c2_22 = arith.constant 2 : index
    %c0_23 = arith.constant 0 : index
    %c0_24 = arith.constant 0 : index
    %39 = vector.load %arg2[%c2_22, %c0_23, %c0_24] : memref<4x1x128xf32, #tpu.memory_space<vmem>>, vector<1x1x128xf32>
    %40 = vector.shape_cast %39 : vector<1x1x128xf32> to vector<1x128xf32>
    %41 = vector.broadcast %40 : vector<1x128xf32> to vector<8x128xf32>
    %42 = arith.addf %38, %41 : vector<8x128xf32>
    %cst_25 = arith.constant 0.000000e+00 : f32
    %43 = vector.broadcast %cst_25 : f32 to vector<8x128xf32>
    %44 = arith.cmpf oge, %42, %43 : vector<8x128xf32>
    %cst_26 = arith.constant 2.000000e-01 : f32
    %45 = vector.broadcast %cst_26 : f32 to vector<8x128xf32>
    %46 = arith.mulf %45, %42 : vector<8x128xf32>
    %47 = arith.select %44, %42, %46 : vector<8x128xi1>, vector<8x128xf32>
    %c3 = arith.constant 3 : index
    %c0_27 = arith.constant 0 : index
    %c0_28 = arith.constant 0 : index
    %48 = vector.load %arg1[%c3, %c0_27, %c0_28] : memref<4x128x128xbf16, #tpu.memory_space<vmem>>, vector<1x128x128xbf16>
    %49 = vector.shape_cast %48 : vector<1x128x128xbf16> to vector<128x128xbf16>
    %50 = arith.truncf %47 : vector<8x128xf32> to vector<8x128xbf16>
    %cst_29 = arith.constant dense<0.000000e+00> : vector<8x128xf32>
    %51 = tpu.matmul %50, %49, %cst_29 {dimension_numbers = #tpu.dot_dimension_numbers<[1], [0], [0], [1], [0, 0, 1, 1], [], []>} : vector<8x128xbf16>, vector<128x128xbf16>, vector<8x128xf32> -> vector<8x128xf32>
    %c3_30 = arith.constant 3 : index
    %c0_31 = arith.constant 0 : index
    %c0_32 = arith.constant 0 : index
    %52 = vector.load %arg2[%c3_30, %c0_31, %c0_32] : memref<4x1x128xf32, #tpu.memory_space<vmem>>, vector<1x1x128xf32>
    %53 = vector.shape_cast %52 : vector<1x1x128xf32> to vector<1x128xf32>
    %54 = vector.broadcast %53 : vector<1x128xf32> to vector<8x128xf32>
    %55 = arith.addf %51, %54 : vector<8x128xf32>
    %cst_33 = arith.constant 0.000000e+00 : f32
    %56 = vector.broadcast %cst_33 : f32 to vector<8x128xf32>
    %57 = arith.cmpf oge, %55, %56 : vector<8x128xf32>
    %cst_34 = arith.constant 2.000000e-01 : f32
    %58 = vector.broadcast %cst_34 : f32 to vector<8x128xf32>
    %59 = arith.mulf %58, %55 : vector<8x128xf32>
    %60 = arith.select %57, %55, %59 : vector<8x128xi1>, vector<8x128xf32>
    %c0_35 = arith.constant 0 : index
    %61 = memref.load %arg3[%c0_35] : memref<1xf32, #tpu.memory_space<smem>>
    %62 = vector.broadcast %61 : f32 to vector<8x128xf32>
    %63 = arith.mulf %60, %62 : vector<8x128xf32>
    %c0_36 = arith.constant 0 : index
    %c0_37 = arith.constant 0 : index
    %64 = vector.load %arg4[%c0_36, %c0_37] : memref<8x128xf32, #tpu.memory_space<vmem>>, vector<8x128xf32>
    tpu.vector_store %arg4[%c0_36, %c0_37], %63 {strides = array<i32>} : memref<8x128xf32, #tpu.memory_space<vmem>>, vector<8x128xf32>,
    return
  }
}

</mosaic_0001>

<llo_original>
// kernel: tpu_custom_call.1
$region0: #{tpu_custom_call.1}
  #allocation0 [shape = 'u32[]', space=smem, size = 0x4, offset = 0x4, fixed_abs, tag = 'smem constant byte address 0x4 - core index']
  #allocation1 [shape = 'u32[144,128]{1,0:T(1,128)}', space=vmem, size = 0x12000, scoped, tag = 'internal scratch']
  #allocation2 [shape = 'f32[1]{0:T(128)S(6)}', space=smem, size = 0x200, scoped, tag = 'scoped memory for tpu_custom_call.1']
  %s0 = inlined_call_operand.hbm [shape: f32[8,128], index: 0, kind: input, shape index: {}]
  %s1 = inlined_call_operand.hbm [shape: bf16[4,128,128], index: 1, kind: input, shape index: {}]
  %s2 = inlined_call_operand.vmem [shape: f32[4,1,128], index: 2, kind: input, shape index: {}]
  %s3 = inlined_call_operand.<no memory space> [shape: f32[1], index: 3, kind: input, shape index: {}]
  %s4 = inlined_call_operand.hbm [shape: f32[8,128], index: 4, kind: output, shape index: {}]
  %s5 = sld [smem:[#allocation0]]
  $region34: #{tpu_custom_call.1} parent=0
    _
  %s7 = ssub.s32 1, %s5
  %s8 = scalar_select 0, %s7, %s5
  %9 = sst [smem:[#allocation2]] %s3
  $region1: #{tpu_custom_call.1} parent=0
    #allocation3 [shape = 'u8[4096]{0}', space=vmem, size = 0x1000, scoped, tag = 'input window, operand 0, single buffered']
    #allocation4 [shape = 's32[1]{0}', space=sflag, size = 0x4, scoped, tag = 'scoped memory for tpu_custom_call.1']
    #allocation5 [shape = 's32[1]{0}', space=sflag, size = 0x4, scoped, tag = 'scoped memory for tpu_custom_call.1']
    #allocation6 [shape = 'u8[131072]{0}', space=vmem, size = 0x20000, scoped, tag = 'input window, operand 1, single buffered']
    #allocation7 [shape = 's32[1]{0}', space=sflag, size = 0x4, scoped, tag = 'scoped memory for tpu_custom_call.1']
    #allocation8 [shape = 'u8[4096]{0}', space=vmem, size = 0x1000, scoped, tag = 'output window, operand 0, single buffered']
    %10 = vsyncpa [#allocation4], 0
    %11 = vsyncpa [#allocation7], 0
    %12 = vsyncpa [#allocation5], 0
    // Predicated region
    $region2: #{tpu_custom_call.1} parent=1 // pred_check
      _
    $region3: #{tpu_custom_call.1} parent=1 // pred_check_branch
      %14 = sbr.rel (0) target = $region5
    $region4: #{tpu_custom_call.1} parent=1 // pred_region
      %s16 = ssub.s32 128, 128
      %17 = vsyncadd [#allocation4], %s16
      %s19 = sshll.u32 [#allocation3], 4
      %s20 = int_to_ptr.vmem [resolvable:$true] %s19
      %22 = dma.hbm_to_vmem [thread:$0]  %s0, 128, %s20, [#allocation4]
    $region5: #{tpu_custom_call.1} parent=1 // pred_fallthru
      _
    // Predicated region
    $region6: #{tpu_custom_call.1} parent=1 // pred_check
      _
    $region7: #{tpu_custom_call.1} parent=1 // pred_check_branch
      %24 = sbr.rel (0) target = $region9
    $region8: #{tpu_custom_call.1} parent=1 // pred_region
      %s26 = ssub.s32 4096, 4096
      %27 = vsyncadd [#allocation7], %s26
      %s28 = sshll.u32 [#allocation6], 4
      %s29 = int_to_ptr.vmem [resolvable:$true] %s28
      %34 = dma.hbm_to_vmem [thread:$0]  %s1, 4096, %s29, [#allocation7], 64, 64, 4
    $region9: #{tpu_custom_call.1} parent=1 // pred_fallthru
      _
    // Predicated region
    $region10: #{tpu_custom_call.1} parent=1 // pred_check
      _
    $region11: #{tpu_custom_call.1} parent=1 // pred_check_branch
      %36 = sbr.rel (0) target = $region13
    $region12: #{tpu_custom_call.1} parent=1 // pred_region
      _
    $region13: #{tpu_custom_call.1} parent=1 // pred_fallthru
      _
    // Predicated region
    $region14: #{tpu_custom_call.1} parent=1 // pred_check
      _
    $region15: #{tpu_custom_call.1} parent=1 // pred_check_branch
      %38 = sbr.rel (0) target = $region17
    $region16: #{tpu_custom_call.1} parent=1 // pred_region
      _
    $region17: #{tpu_custom_call.1} parent=1 // pred_fallthru
      _
    // Predicated region
    $region18: #{tpu_custom_call.1} parent=1 // pred_check
      _
    $region19: #{tpu_custom_call.1} parent=1 // pred_check_branch
      %40 = sbr.rel (0) target = $region21
    $region20: #{tpu_custom_call.1} parent=1 // pred_region
      %41 = dma.done [#allocation4], 128
    $region21: #{tpu_custom_call.1} parent=1 // pred_fallthru
      _
    // Predicated region
    $region22: #{tpu_custom_call.1} parent=1 // pred_check
      _
    $region23: #{tpu_custom_call.1} parent=1 // pred_check_branch
      %43 = sbr.rel (0) target = $region25
    $region24: #{tpu_custom_call.1} parent=1 // pred_region
      %44 = dma.done [#allocation7], 4096
    $region25: #{tpu_custom_call.1} parent=1 // pred_fallthru
      _
    %v46 = vld [vmem:[#allocation3] sm:$0xff]
    %v47 = vmul.f32 %v46, %v46
    %48 = vadd.xlane.f32.xlu0 %v47
    %v49 = vpop.xlane.xlu0 %48
    %v50 = vmax.f32 %v49, 1e-24
    %v51 = vrsqrt.pop %v50
    %v52 = vmul.f32 %v46, %v51
    %v53 = vld [vmem:[#allocation6] sm:$0xf]
    %v54 = vld [vmem:[#allocation6 + $0x4] sm:$0xf]
    %v55 = vld [vmem:[#allocation6 + $0x8] sm:$0xf]
    %v56 = vld [vmem:[#allocation6 + $0xc] sm:$0xf]
    %v57 = vld [vmem:[#allocation6 + $0x10] sm:$0xf]
    %v58 = vld [vmem:[#allocation6 + $0x14] sm:$0xf]
    %v59 = vld [vmem:[#allocation6 + $0x18] sm:$0xf]
    %v60 = vld [vmem:[#allocation6 + $0x1c] sm:$0xf]
    %v61 = vld [vmem:[#allocation6 + $0x20] sm:$0xf]
    %v62 = vld [vmem:[#allocation6 + $0x24] sm:$0xf]
    %v63 = vld [vmem:[#allocation6 + $0x28] sm:$0xf]
    %v64 = vld [vmem:[#allocation6 + $0x2c] sm:$0xf]
    %v65 = vld [vmem:[#allocation6 + $0x30] sm:$0xf]
    %v66 = vld [vmem:[#allocation6 + $0x34] sm:$0xf]
    %v67 = vld [vmem:[#allocation6 + $0x38] sm:$0xf]
    %v68 = vld [vmem:[#allocation6 + $0x3c] sm:$0xf]
    %v69 = vpack.c.bf16 %v52, %v52
    %v70 = vld [vmem:[%s2] sm:$0x1]
    %v72 = vlaneseq
    %v73 = vshrl.u32 %v72, 7
    %v74 = vsub.s32 0, %v73
    %v75 = vrot.slane %v70, %v74
    %v93 = vunpack.c.l.b16 %v53
    %v94 = vunpack.c.l.b16 %v54
    %v95 = vunpack.c.l.b16 %v55
    %v96 = vunpack.c.l.b16 %v56
    %v97 = vunpack.c.l.b16 %v57
    %v98 = vunpack.c.l.b16 %v58
    %v99 = vunpack.c.l.b16 %v59
    %v100 = vunpack.c.l.b16 %v60
    %v101 = vunpack.c.l.b16 %v61
    %v102 = vunpack.c.l.b16 %v62
    %v103 = vunpack.c.l.b16 %v63
    %v104 = vunpack.c.l.b16 %v64
    %v105 = vunpack.c.l.b16 %v65
    %v106 = vunpack.c.l.b16 %v66
    %v107 = vunpack.c.l.b16 %v67
    %v108 = vunpack.c.l.b16 %v68
    %v109 = vpack.c.b16 %v94, %v93
    %v110 = vpack.c.b16 %v96, %v95
    %v111 = vpack.c.b16 %v98, %v97
    %v112 = vpack.c.b16 %v100, %v99
    %v113 = vpack.c.b16 %v102, %v101
    %v114 = vpack.c.b16 %v104, %v103
    %v115 = vpack.c.b16 %v106, %v105
    %v116 = vpack.c.b16 %v108, %v107
    %125 = vmatprep.subr.bf16.mxu0 0
    %126 = vmatpush1.bf16.msra.mxu0 %v109
    %127 = vmatprep.subr.bf16.mxu0 0
    %128 = vmatpush1.bf16.msra.mxu0 %v110
    %129 = vmatprep.subr.bf16.mxu0 0
    %130 = vmatpush1.bf16.msra.mxu0 %v111
    %131 = vmatprep.subr.bf16.mxu0 0
    %132 = vmatpush1.bf16.msra.mxu0 %v112
    %133 = vmatprep.subr.bf16.mxu0 0
    %134 = vmatpush1.bf16.msra.mxu0 %v113
    %135 = vmatprep.subr.bf16.mxu0 0
    %136 = vmatpush1.bf16.msra.mxu0 %v114
    %137 = vmatprep.subr.bf16.mxu0 0
    %138 = vmatpush1.bf16.msra.mxu0 %v115
    %139 = vmatprep.subr.bf16.mxu0 0
    %140 = vmatpush1.bf16.msra.mxu0 %v116
    %141 = vmatprep.subr.bf16.mxu0 0
    %142 = vmatpush1.bf16.msra.mxu0 0
    %143 = vmatprep.subr.bf16.mxu0 0
    %144 = vmatpush1.bf16.msra.mxu0 0
    %145 = vmatprep.subr.bf16.mxu0 0
    %146 = vmatpush1.bf16.msra.mxu0 0
    %147 = vmatprep.subr.bf16.mxu0 0
    %148 = vmatpush1.bf16.msra.mxu0 0
    %149 = vmatprep.subr.bf16.mxu0 0
    %150 = vmatpush1.bf16.msra.mxu0 0
    %151 = vmatprep.subr.bf16.mxu0 0
    %152 = vmatpush1.bf16.msra.mxu0 0
    %153 = vmatprep.subr.bf16.mxu0 0
    %154 = vmatpush1.bf16.msra.mxu0 0
    %155 = vmatprep.subr.bf16.mxu0 0
    %156 = vmatpush1.bf16.msra.mxu0 0
    %157 = vmatprep.mubr.bf16.mxu0 0
    %158 = vmatmul.mubr.bf16.gmra.mrb[0].mxu0 %v69
    %v159 = vpop.f32.mrb[0].mxu0
    %v160 = vadd.f32 %v75, %v159
    %v161 = vpop.f32.mrb[0].mxu0
    %v162 = vpop.f32.mrb[0].mxu0
    %v163 = vpop.f32.mrb[0].mxu0
    %164 = vdwg.mxu0
    %vm165 = vcmp.ge.f32.partialorder %v160, 0.0
    %v166 = vmul.f32 %v160, 0.2
    %v167 = vsel %vm165, %v160, %v166
    %s168 = scalar_lea.vmem [#allocation6], 64
    %v169 = vld [vmem:[%s168] sm:$0xf]
    %v170 = vld [vmem:[%s168 + $0x4] sm:$0xf]
    %v171 = vld [vmem:[%s168 + $0x8] sm:$0xf]
    %v172 = vld [vmem:[%s168 + $0xc] sm:$0xf]
    %v173 = vld [vmem:[%s168 + $0x10] sm:$0xf]
    %v174 = vld [vmem:[%s168 + $0x14] sm:$0xf]
    %v175 = vld [vmem:[%s168 + $0x18] sm:$0xf]
    %v176 = vld [vmem:[%s168 + $0x1c] sm:$0xf]
    %v177 = vld [vmem:[%s168 + $0x20] sm:$0xf]
    %v178 = vld [vmem:[%s168 + $0x24] sm:$0xf]
    %v179 = vld [vmem:[%s168 + $0x28] sm:$0xf]
    %v180 = vld [vmem:[%s168 + $0x2c] sm:$0xf]
    %v181 = vld [vmem:[%s168 + $0x30] sm:$0xf]
    %v182 = vld [vmem:[%s168 + $0x34] sm:$0xf]
    %v183 = vld [vmem:[%s168 + $0x38] sm:$0xf]
    %v184 = vld [vmem:[%s168 + $0x3c] sm:$0xf]
    %v185 = vpack.c.bf16 %v167, %v167
    %s186 = scalar_lea.vmem %s2, 1
    %v187 = vld [vmem:[%s186] sm:$0x1]
    %v189 = vlaneseq
    %v190 = vshrl.u32 %v189, 7
    %v191 = vsub.s32 0, %v190
    %v192 = vrot.slane %v187, %v191
    %v210 = vunpack.c.l.b16 %v169
    %v211 = vunpack.c.l.b16 %v170
    %v212 = vunpack.c.l.b16 %v171
    %v213 = vunpack.c.l.b16 %v172
    %v214 = vunpack.c.l.b16 %v173
    %v215 = vunpack.c.l.b16 %v174
    %v216 = vunpack.c.l.b16 %v175
    %v217 = vunpack.c.l.b16 %v176
    %v218 = vunpack.c.l.b16 %v177
    %v219 = vunpack.c.l.b16 %v178
    %v220 = vunpack.c.l.b16 %v179
    %v221 = vunpack.c.l.b16 %v180
    %v222 = vunpack.c.l.b16 %v181
    %v223 = vunpack.c.l.b16 %v182
    %v224 = vunpack.c.l.b16 %v183
    %v225 = vunpack.c.l.b16 %v184
    %v226 = vpack.c.b16 %v211, %v210
    %v227 = vpack.c.b16 %v213, %v212
    %v228 = vpack.c.b16 %v215, %v214
    %v229 = vpack.c.b16 %v217, %v216
    %v230 = vpack.c.b16 %v219, %v218
    %v231 = vpack.c.b16 %v221, %v220
    %v232 = vpack.c.b16 %v223, %v222
    %v233 = vpack.c.b16 %v225, %v224
    %242 = vmatprep.subr.bf16.mxu0 0
    %243 = vmatpush1.bf16.msra.mxu0 %v226
    %244 = vmatprep.subr.bf16.mxu0 0
    %245 = vmatpush1.bf16.msra.mxu0 %v227
    %246 = vmatprep.subr.bf16.mxu0 0
    %247 = vmatpush1.bf16.msra.mxu0 %v228
    %248 = vmatprep.subr.bf16.mxu0 0
    %249 = vmatpush1.bf16.msra.mxu0 %v229
    %250 = vmatprep.subr.bf16.mxu0 0
    %251 = vmatpush1.bf16.msra.mxu0 %v230
    %252 = vmatprep.subr.bf16.mxu0 0
    %253 = vmatpush1.bf16.msra.mxu0 %v231
    %254 = vmatprep.subr.bf16.mxu0 0
    %255 = vmatpush1.bf16.msra.mxu0 %v232
    %256 = vmatprep.subr.bf16.mxu0 0
    %257 = vmatpush1.bf16.msra.mxu0 %v233
    %258 = vmatprep.subr.bf16.mxu0 0
    %259 = vmatpush1.bf16.msra.mxu0 0
    %260 = vmatprep.subr.bf16.mxu0 0
    %261 = vmatpush1.bf16.msra.mxu0 0
    %262 = vmatprep.subr.bf16.mxu0 0
    %263 = vmatpush1.bf16.msra.mxu0 0
    %264 = vmatprep.subr.bf16.mxu0 0
    %265 = vmatpush1.bf16.msra.mxu0 0
    %266 = vmatprep.subr.bf16.mxu0 0
    %267 = vmatpush1.bf16.msra.mxu0 0
    %268 = vmatprep.subr.bf16.mxu0 0
    %269 = vmatpush1.bf16.msra.mxu0 0
    %270 = vmatprep.subr.bf16.mxu0 0
    %271 = vmatpush1.bf16.msra.mxu0 0
    %272 = vmatprep.subr.bf16.mxu0 0
    %273 = vmatpush1.bf16.msra.mxu0 0
    %274 = vmatprep.mubr.bf16.mxu0 0
    %275 = vmatmul.mubr.bf16.gmra.mrb[0].mxu0 %v185
    %v276 = vpop.f32.mrb[0].mxu0
    %v277 = vadd.f32 %v192, %v276
    %v278 = vpop.f32.mrb[0].mxu0
    %v279 = vpop.f32.mrb[0].mxu0
    %v280 = vpop.f32.mrb[0].mxu0
    %281 = vdwg.mxu0
    %vm282 = vcmp.ge.f32.partialorder %v277, 0.0
    %v283 = vmul.f32 %v277, 0.2
    %v284 = vsel %vm282, %v277, %v283
    %s285 = scalar_lea.vmem [#allocation6], 128
    %v286 = vld [vmem:[%s285] sm:$0xf]
    %v287 = vld [vmem:[%s285 + $0x4] sm:$0xf]
    %v288 = vld [vmem:[%s285 + $0x8] sm:$0xf]
    %v289 = vld [vmem:[%s285 + $0xc] sm:$0xf]
    %v290 = vld [vmem:[%s285 + $0x10] sm:$0xf]
    %v291 = vld [vmem:[%s285 + $0x14] sm:$0xf]
    %v292 = vld [vmem:[%s285 + $0x18] sm:$0xf]
    %v293 = vld [vmem:[%s285 + $0x1c] sm:$0xf]
    %v294 = vld [vmem:[%s285 + $0x20] sm:$0xf]
    %v295 = vld [vmem:[%s285 + $0x24] sm:$0xf]
    %v296 = vld [vmem:[%s285 + $0x28] sm:$0xf]
    %v297 = vld [vmem:[%s285 + $0x2c] sm:$0xf]
    %v298 = vld [vmem:[%s285 + $0x30] sm:$0xf]
    %v299 = vld [vmem:[%s285 + $0x34] sm:$0xf]
    %v300 = vld [vmem:[%s285 + $0x38] sm:$0xf]
    %v301 = vld [vmem:[%s285 + $0x3c] sm:$0xf]
    %v302 = vpack.c.bf16 %v284, %v284
    %s303 = scalar_lea.vmem %s2, 2
    %v304 = vld [vmem:[%s303] sm:$0x1]
    %v306 = vlaneseq
    %v307 = vshrl.u32 %v306, 7
    %v308 = vsub.s32 0, %v307
    %v309 = vrot.slane %v304, %v308
    %v327 = vunpack.c.l.b16 %v286
    %v328 = vunpack.c.l.b16 %v287
    %v329 = vunpack.c.l.b16 %v288
    %v330 = vunpack.c.l.b16 %v289
    %v331 = vunpack.c.l.b16 %v290
    %v332 = vunpack.c.l.b16 %v291
    %v333 = vunpack.c.l.b16 %v292
    %v334 = vunpack.c.l.b16 %v293
    %v335 = vunpack.c.l.b16 %v294
    %v336 = vunpack.c.l.b16 %v295
    %v337 = vunpack.c.l.b16 %v296
    %v338 = vunpack.c.l.b16 %v297
    %v339 = vunpack.c.l.b16 %v298
    %v340 = vunpack.c.l.b16 %v299
    %v341 = vunpack.c.l.b16 %v300
    %v342 = vunpack.c.l.b16 %v301
    %v343 = vpack.c.b16 %v328, %v327
    %v344 = vpack.c.b16 %v330, %v329
    %v345 = vpack.c.b16 %v332, %v331
    %v346 = vpack.c.b16 %v334, %v333
    %v347 = vpack.c.b16 %v336, %v335
    %v348 = vpack.c.b16 %v338, %v337
    %v349 = vpack.c.b16 %v340, %v339
    %v350 = vpack.c.b16 %v342, %v341
    %359 = vmatprep.subr.bf16.mxu0 0
    %360 = vmatpush1.bf16.msra.mxu0 %v343
    %361 = vmatprep.subr.bf16.mxu0 0
    %362 = vmatpush1.bf16.msra.mxu0 %v344
    %363 = vmatprep.subr.bf16.mxu0 0
    %364 = vmatpush1.bf16.msra.mxu0 %v345
    %365 = vmatprep.subr.bf16.mxu0 0
    %366 = vmatpush1.bf16.msra.mxu0 %v346
    %367 = vmatprep.subr.bf16.mxu0 0
    %368 = vmatpush1.bf16.msra.mxu0 %v347
    %369 = vmatprep.subr.bf16.mxu0 0
    %370 = vmatpush1.bf16.msra.mxu0 %v348
    %371 = vmatprep.subr.bf16.mxu0 0
    %372 = vmatpush1.bf16.msra.mxu0 %v349
    %373 = vmatprep.subr.bf16.mxu0 0
    %374 = vmatpush1.bf16.msra.mxu0 %v350
    %375 = vmatprep.subr.bf16.mxu0 0
    %376 = vmatpush1.bf16.msra.mxu0 0
    %377 = vmatprep.subr.bf16.mxu0 0
    %378 = vmatpush1.bf16.msra.mxu0 0
    %379 = vmatprep.subr.bf16.mxu0 0
    %380 = vmatpush1.bf16.msra.mxu0 0
    %381 = vmatprep.subr.bf16.mxu0 0
    %382 = vmatpush1.bf16.msra.mxu0 0
    %383 = vmatprep.subr.bf16.mxu0 0
    %384 = vmatpush1.bf16.msra.mxu0 0
    %385 = vmatprep.subr.bf16.mxu0 0
    %386 = vmatpush1.bf16.msra.mxu0 0
    %387 = vmatprep.subr.bf16.mxu0 0
    %388 = vmatpush1.bf16.msra.mxu0 0
    %389 = vmatprep.subr.bf16.mxu0 0
    %390 = vmatpush1.bf16.msra.mxu0 0
    %391 = vmatprep.mubr.bf16.mxu0 0
    %392 = vmatmul.mubr.bf16.gmra.mrb[0].mxu0 %v302
    %v393 = vpop.f32.mrb[0].mxu0
    %v394 = vadd.f32 %v309, %v393
    %v395 = vpop.f32.mrb[0].mxu0
    %v396 = vpop.f32.mrb[0].mxu0
    %v397 = vpop.f32.mrb[0].mxu0
    %398 = vdwg.mxu0
    %vm399 = vcmp.ge.f32.partialorder %v394, 0.0
    %v400 = vmul.f32 %v394, 0.2
    %v401 = vsel %vm399, %v394, %v400
    %s402 = scalar_lea.vmem [#allocation6], 192
    %v403 = vld [vmem:[%s402] sm:$0xf]
    %v404 = vld [vmem:[%s402 + $0x4] sm:$0xf]
    %v405 = vld [vmem:[%s402 + $0x8] sm:$0xf]
    %v406 = vld [vmem:[%s402 + $0xc] sm:$0xf]
    %v407 = vld [vmem:[%s402 + $0x10] sm:$0xf]
    %v408 = vld [vmem:[%s402 + $0x14] sm:$0xf]
    %v409 = vld [vmem:[%s402 + $0x18] sm:$0xf]
    %v410 = vld [vmem:[%s402 + $0x1c] sm:$0xf]
    %v411 = vld [vmem:[%s402 + $0x20] sm:$0xf]
    %v412 = vld [vmem:[%s402 + $0x24] sm:$0xf]
    %v413 = vld [vmem:[%s402 + $0x28] sm:$0xf]
    %v414 = vld [vmem:[%s402 + $0x2c] sm:$0xf]
    %v415 = vld [vmem:[%s402 + $0x30] sm:$0xf]
    %v416 = vld [vmem:[%s402 + $0x34] sm:$0xf]
    %v417 = vld [vmem:[%s402 + $0x38] sm:$0xf]
    %v418 = vld [vmem:[%s402 + $0x3c] sm:$0xf]
    %v419 = vpack.c.bf16 %v401, %v401
    %s420 = scalar_lea.vmem %s2, 3
    %v421 = vld [vmem:[%s420] sm:$0x1]
    %v423 = vlaneseq
    %v424 = vshrl.u32 %v423, 7
    %v425 = vsub.s32 0, %v424
    %v426 = vrot.slane %v421, %v425
    %v444 = vunpack.c.l.b16 %v403
    %v445 = vunpack.c.l.b16 %v404
    %v446 = vunpack.c.l.b16 %v405
    %v447 = vunpack.c.l.b16 %v406
    %v448 = vunpack.c.l.b16 %v407
    %v449 = vunpack.c.l.b16 %v408
    %v450 = vunpack.c.l.b16 %v409
    %v451 = vunpack.c.l.b16 %v410
    %v452 = vunpack.c.l.b16 %v411
    %v453 = vunpack.c.l.b16 %v412
    %v454 = vunpack.c.l.b16 %v413
    %v455 = vunpack.c.l.b16 %v414
    %v456 = vunpack.c.l.b16 %v415
    %v457 = vunpack.c.l.b16 %v416
    %v458 = vunpack.c.l.b16 %v417
    %v459 = vunpack.c.l.b16 %v418
    %v460 = vpack.c.b16 %v445, %v444
    %v461 = vpack.c.b16 %v447, %v446
    %v462 = vpack.c.b16 %v449, %v448
    %v463 = vpack.c.b16 %v451, %v450
    %v464 = vpack.c.b16 %v453, %v452
    %v465 = vpack.c.b16 %v455, %v454
    %v466 = vpack.c.b16 %v457, %v456
    %v467 = vpack.c.b16 %v459, %v458
    %476 = vmatprep.subr.bf16.mxu0 0
    %477 = vmatpush1.bf16.msra.mxu0 %v460
    %478 = vmatprep.subr.bf16.mxu0 0
    %479 = vmatpush1.bf16.msra.mxu0 %v461
    %480 = vmatprep.subr.bf16.mxu0 0
    %481 = vmatpush1.bf16.msra.mxu0 %v462
    %482 = vmatprep.subr.bf16.mxu0 0
    %483 = vmatpush1.bf16.msra.mxu0 %v463
    %484 = vmatprep.subr.bf16.mxu0 0
    %485 = vmatpush1.bf16.msra.mxu0 %v464
    %486 = vmatprep.subr.bf16.mxu0 0
    %487 = vmatpush1.bf16.msra.mxu0 %v465
    %488 = vmatprep.subr.bf16.mxu0 0
    %489 = vmatpush1.bf16.msra.mxu0 %v466
    %490 = vmatprep.subr.bf16.mxu0 0
    %491 = vmatpush1.bf16.msra.mxu0 %v467
    %492 = vmatprep.subr.bf16.mxu0 0
    %493 = vmatpush1.bf16.msra.mxu0 0
    %494 = vmatprep.subr.bf16.mxu0 0
    %495 = vmatpush1.bf16.msra.mxu0 0
    %496 = vmatprep.subr.bf16.mxu0 0
    %497 = vmatpush1.bf16.msra.mxu0 0
    %498 = vmatprep.subr.bf16.mxu0 0
    %499 = vmatpush1.bf16.msra.mxu0 0
    %500 = vmatprep.subr.bf16.mxu0 0
    %501 = vmatpush1.bf16.msra.mxu0 0
    %502 = vmatprep.subr.bf16.mxu0 0
    %503 = vmatpush1.bf16.msra.mxu0 0
    %504 = vmatprep.subr.bf16.mxu0 0
    %505 = vmatpush1.bf16.msra.mxu0 0
    %506 = vmatprep.subr.bf16.mxu0 0
    %507 = vmatpush1.bf16.msra.mxu0 0
    %508 = vmatprep.mubr.bf16.mxu0 0
    %509 = vmatmul.mubr.bf16.gmra.mrb[0].mxu0 %v419
    %v510 = vpop.f32.mrb[0].mxu0
    %v511 = vadd.f32 %v426, %v510
    %v512 = vpop.f32.mrb[0].mxu0
    %v513 = vpop.f32.mrb[0].mxu0
    %v514 = vpop.f32.mrb[0].mxu0
    %515 = vdwg.mxu0
    %vm516 = vcmp.ge.f32.partialorder %v511, 0.0
    %v517 = vmul.f32 %v511, 0.2
    %v518 = vsel %vm516, %v511, %v517
    %s519 = sld [smem:[#allocation2]]
    %v520 = vstv %s519
    %v521 = vmul.f32 %v518, %v520
    %522 = vst [vmem:[#allocation8] sm:$0xff] %v521
    // Predicated region
    $region26: #{tpu_custom_call.1} parent=1 // pred_check
      _
    $region27: #{tpu_custom_call.1} parent=1 // pred_check_branch
      %524 = sbr.rel (0) target = $region29
    $region28: #{tpu_custom_call.1} parent=1 // pred_region
      %s526 = ssub.s32 128, 128
      %527 = vsyncadd [#allocation5], %s526
      %s529 = sshll.u32 [#allocation8], 4
      %s530 = int_to_ptr.vmem [resolvable:$true] %s529
      %532 = dma.vmem_to_hbm [thread:$0]  %s530, 128, %s4, [#allocation5]
    $region29: #{tpu_custom_call.1} parent=1 // pred_fallthru
      _
    // Predicated region
    $region30: #{tpu_custom_call.1} parent=1 // pred_check
      _
    $region31: #{tpu_custom_call.1} parent=1 // pred_check_branch
      %534 = sbr.rel (0) target = $region33
    $region32: #{tpu_custom_call.1} parent=1 // pred_region
      %535 = dma.done [#allocation5], 128
    $region33: #{tpu_custom_call.1} parent=1 // pred_fallthru
      _
    %536 = vsyncpa [#allocation4], 1
    %537 = vsyncpa [#allocation7], 1
    %538 = vsyncpa [#allocation5], 1

</llo_original>
